<compile_context>
chip_gen: v7x
topology: tpu7x:2x2x1
jax: 0.10.0
libtpu: 0.0.40
codegen_flags: <defaults>
</compile_context>

<pallas_src>
import functools

import jax
import jax.numpy as jnp
from jax.experimental import pallas as pl
from jax.experimental.pallas import tpu as pltpu


IN_DIM = 2048
HID_DIM = 100      # logical hidden width (PyTorch module)
HID_PAD = 128      # lane-dense padded hidden width used on-chip
OUT_DIM = 6


def _round_up(n, m):
    return ((n + m - 1) // m) * m


def _camera_classifier_kernel(x_ref, w1_ref, b1_ref, w2_ref, b2_ref, o_ref):
    # x_ref: [TB, 2048] bf16   w1_ref: [2048, 128] bf16   b1_ref: [1, 128] f32
    # w2_ref: [128, 6] f32     b2_ref: [1, 6] f32         o_ref: [TB, 6] f32
    x = x_ref[...]

    # fc1 (bf16 MXU matmul, f32 accumulation) + bias + ReLU in f32.
    h = jnp.dot(x, w1_ref[...], preferred_element_type=jnp.float32)
    h = jnp.maximum(h + b1_ref[...], 0.0)                       # [TB, 128]
    # Padded columns 100..127 of w1/b1 are zero -> h[:, 100:] == 0 after ReLU,
    # and the zero rows of w2 make fc2 identical to the unpadded computation.

    # fc2 (tiny) in f32.
    logits = jnp.dot(h, w2_ref[...], preferred_element_type=jnp.float32)
    logits = logits + b2_ref[...]                               # [TB, 6]

    # Numerically stable log_softmax along axis 1.
    m = jnp.max(logits, axis=1, keepdims=True)
    shifted = logits - m
    lse = jnp.log(jnp.sum(jnp.exp(shifted), axis=1, keepdims=True))
    o_ref[...] = shifted - lse


@functools.partial(jax.jit, static_argnames=("block_b",))
def camera_classifier_forward(x, constant, w1, b1, w2, b2, *, block_b=512):
    """x: [B, 2048] f32.  constant: grad-reverse scale (unused in forward).

    w1: [2048, 100], b1: [1, 100], w2: [100, 6], b2: [1, 6]  (weights stored
    as [in, out], i.e. already transposed vs. PyTorch's [out, in]).
    """
    del constant  # GradReverse is identity in the forward pass.
    B = x.shape[0]

    # --- parameter prep (layout plumbing, outside the kernel) -------------
    # bf16 fc1 weights, hidden dim padded 100 -> 128 with zeros.
    w1p = jnp.zeros((IN_DIM, HID_PAD), jnp.bfloat16)
    w1p = w1p.at[:, :HID_DIM].set(w1.astype(jnp.bfloat16))
    b1p = jnp.zeros((1, HID_PAD), jnp.float32).at[:, :HID_DIM].set(b1)
    w2p = jnp.zeros((HID_PAD, OUT_DIM), jnp.float32).at[:HID_DIM, :].set(w2)
    b2p = b2.astype(jnp.float32)

    # bf16 activation stream (halves the dominant HBM traffic).
    xb = x.astype(jnp.bfloat16)

    # --- batch tiling ------------------------------------------------------
    tb = min(block_b, _round_up(B, 8))       # sublane-aligned tile
    b_pad = _round_up(B, tb)
    if b_pad != B:
        xb = jnp.pad(xb, ((0, b_pad - B), (0, 0)))
    grid = (b_pad // tb,)

    out = pl.pallas_call(
        _camera_classifier_kernel,
        out_shape=jax.ShapeDtypeStruct((b_pad, OUT_DIM), jnp.float32),
        grid_spec=pltpu.PrefetchScalarGridSpec(
            num_scalar_prefetch=0,
            grid=grid,
            in_specs=[
                pl.BlockSpec((tb, IN_DIM), lambda i: (i, 0)),       # x tile
                pl.BlockSpec((IN_DIM, HID_PAD), lambda i: (0, 0)),  # w1 (resident)
                pl.BlockSpec((1, HID_PAD), lambda i: (0, 0)),       # b1 (resident)
                pl.BlockSpec((HID_PAD, OUT_DIM), lambda i: (0, 0)), # w2 (resident)
                pl.BlockSpec((1, OUT_DIM), lambda i: (0, 0)),       # b2 (resident)
            ],
            out_specs=pl.BlockSpec((tb, OUT_DIM), lambda i: (i, 0)),
        ),
        compiler_params=pltpu.CompilerParams(
            # batch axis is fully independent -> megacore sharding on v7x.
            dimension_semantics=("parallel",),
            vmem_limit_bytes=64 * 1024 * 1024,
        ),
        cost_estimate=pl.CostEstimate(
            flops=2 * b_pad * IN_DIM * HID_PAD + 2 * b_pad * HID_PAD * OUT_DIM,
            transcendentals=b_pad * OUT_DIM,
            bytes_accessed=(b_pad * IN_DIM * 2          # x (bf16)
                            + IN_DIM * HID_PAD * 2      # w1 (bf16)
                            + HID_PAD * OUT_DIM * 4
                            + b_pad * OUT_DIM * 4),     # output
        ),
    )(xb, w1p, b1p, w2p, b2p)

    return out[:B]


def init_params(key):
    """Deterministic init mimicking nn.Linear default (uniform +/- 1/sqrt(fan_in))."""
    k1, k2, k3, k4 = jax.random.split(key, 4)
    bound1 = 1.0 / (IN_DIM ** 0.5)
    bound2 = 1.0 / (HID_DIM ** 0.5)
    # Stored as [in, out] (i.e. already transposed vs. PyTorch's [out, in]).
    w1 = jax.random.uniform(k1, (IN_DIM, HID_DIM), jnp.float32, -bound1, bound1)
    b1 = jax.random.uniform(k2, (1, HID_DIM), jnp.float32, -bound1, bound1)
    w2 = jax.random.uniform(k3, (HID_DIM, OUT_DIM), jnp.float32, -bound2, bound2)
    b2 = jax.random.uniform(k4, (1, OUT_DIM), jnp.float32, -bound2, bound2)
    return w1, b1, w2, b2


def reference_forward(x, w1, b1, w2, b2):
    # Matches the kernel's numerics: bf16 fc1 inputs with f32 accumulation.
    xb = x.astype(jnp.bfloat16)
    w1b = w1.astype(jnp.bfloat16)
    h = jnp.maximum(jnp.dot(xb, w1b, preferred_element_type=jnp.float32) + b1, 0.0)
    z = jnp.dot(h, w2, preferred_element_type=jnp.float32) + b2
    return jax.nn.log_softmax(z, axis=1)


if __name__ == "__main__":
    key = jax.random.PRNGKey(0)
    kx, kp = jax.random.split(key)

    B = 8
    x = jax.random.normal(kx, (B, IN_DIM), jnp.float32)
    constant = 0.5  # grad-reverse scale; only matters for backward
    w1, b1, w2, b2 = init_params(kp)

    out = camera_classifier_forward(x, constant, w1, b1, w2, b2)
    out = jax.block_until_ready(out)

    ref = reference_forward(x, w1, b1, w2, b2)
    assert out.shape == (B, OUT_DIM)
    assert jnp.allclose(out, ref, atol=1e-3, rtol=1e-3), "mismatch vs reference"

    print("KERNEL_OK")
</pallas_src>

<mosaic_0001>
module attributes {stable_mosaic.version = 11 : i64} {
  func.func @_camera_classifier_kernel(%arg0: i32, %arg1: memref<8x2048xbf16, #tpu.memory_space<vmem>>, %arg2: memref<2048x128xbf16, #tpu.memory_space<vmem>>, %arg3: memref<1x128xf32, #tpu.memory_space<vmem>>, %arg4: memref<128x6xf32, #tpu.memory_space<vmem>>, %arg5: memref<1x6xf32, #tpu.memory_space<vmem>>, %arg6: memref<8x6xf32, #tpu.memory_space<vmem>>) attributes {dimension_semantics = [#tpu.dimension_semantics<parallel>], iteration_bounds = array<i64: 1>, scalar_prefetch = 0 : i64, scratch_operands = 0 : i64, tpu.core_type = #tpu.core_type<tc>, window_params = [{transform_indices = @transform_0, window_bounds = array<i64: 8, 2048>}, {pipeline_mode = #tpu.pipeline_mode<synchronous>, transform_indices = @transform_1, window_bounds = array<i64: 2048, 128>}, {pipeline_mode = #tpu.pipeline_mode<synchronous>, transform_indices = @transform_2, window_bounds = array<i64: 1, 128>}, {pipeline_mode = #tpu.pipeline_mode<synchronous>, transform_indices = @transform_3, window_bounds = array<i64: 128, 6>}, {pipeline_mode = #tpu.pipeline_mode<synchronous>, transform_indices = @transform_4, window_bounds = array<i64: 1, 6>}, {transform_indices = @transform_5, window_bounds = array<i64: 8, 6>}]} {
    %c0 = arith.constant 0 : index
    %c0_0 = arith.constant 0 : index
    %0 = vector.load %arg1[%c0, %c0_0] : memref<8x2048xbf16, #tpu.memory_space<vmem>>, vector<8x2048xbf16>
    %c0_1 = arith.constant 0 : index
    %c0_2 = arith.constant 0 : index
    %1 = vector.load %arg2[%c0_1, %c0_2] : memref<2048x128xbf16, #tpu.memory_space<vmem>>, vector<2048x128xbf16>
    %cst = arith.constant dense<0.000000e+00> : vector<8x128xf32>
    %2 = tpu.matmul %0, %1, %cst {dimension_numbers = #tpu.dot_dimension_numbers<[1], [0], [0], [1], [0, 0, 1, 1], [], []>} : vector<8x2048xbf16>, vector<2048x128xbf16>, vector<8x128xf32> -> vector<8x128xf32>
    %c0_3 = arith.constant 0 : index
    %c0_4 = arith.constant 0 : index
    %3 = vector.load %arg3[%c0_3, %c0_4] : memref<1x128xf32, #tpu.memory_space<vmem>>, vector<1x128xf32>
    %4 = vector.broadcast %3 : vector<1x128xf32> to vector<8x128xf32>
    %5 = arith.addf %2, %4 : vector<8x128xf32>
    %cst_5 = arith.constant 0.000000e+00 : f32
    %6 = vector.broadcast %cst_5 : f32 to vector<8x128xf32>
    %7 = arith.maximumf %5, %6 : vector<8x128xf32>
    %c0_6 = arith.constant 0 : index
    %c0_7 = arith.constant 0 : index
    %8 = vector.load %arg4[%c0_6, %c0_7] : memref<128x6xf32, #tpu.memory_space<vmem>>, vector<128x6xf32>
    %cst_8 = arith.constant dense<0.000000e+00> : vector<8x6xf32>
    %9 = tpu.matmul %7, %8, %cst_8 {dimension_numbers = #tpu.dot_dimension_numbers<[1], [0], [0], [1], [0, 0, 1, 1], [], []>} : vector<8x128xf32>, vector<128x6xf32>, vector<8x6xf32> -> vector<8x6xf32>
    %c0_9 = arith.constant 0 : index
    %c0_10 = arith.constant 0 : index
    %10 = vector.load %arg5[%c0_9, %c0_10] : memref<1x6xf32, #tpu.memory_space<vmem>>, vector<1x6xf32>
    %11 = vector.broadcast %10 : vector<1x6xf32> to vector<8x6xf32>
    %12 = arith.addf %9, %11 : vector<8x6xf32>
    %cst_11 = arith.constant dense<0xFF800000> : vector<8xf32>
    %13 = vector.multi_reduction <maximumf>, %12, %cst_11 [1] : vector<8x6xf32> to vector<8xf32>
    %14 = vector.shape_cast %13 : vector<8xf32> to vector<8x1xf32>
    %15 = vector.broadcast %14 : vector<8x1xf32> to vector<8x6xf32>
    %16 = arith.subf %12, %15 : vector<8x6xf32>
    %17 = math.exp %16 : vector<8x6xf32>
    %cst_12 = arith.constant dense<0.000000e+00> : vector<8xf32>
    %18 = vector.multi_reduction <add>, %17, %cst_12 [1] : vector<8x6xf32> to vector<8xf32>
    %19 = vector.shape_cast %18 : vector<8xf32> to vector<8x1xf32>
    %20 = math.log %19 : vector<8x1xf32>
    %21 = vector.broadcast %20 : vector<8x1xf32> to vector<8x6xf32>
    %22 = arith.subf %16, %21 : vector<8x6xf32>
    %c0_13 = arith.constant 0 : index
    %c0_14 = arith.constant 0 : index
    %23 = vector.load %arg6[%c0_13, %c0_14] : memref<8x6xf32, #tpu.memory_space<vmem>>, vector<8x6xf32>
    tpu.vector_store %arg6[%c0_13, %c0_14], %22 {strides = array<i32>} : memref<8x6xf32, #tpu.memory_space<vmem>>, vector<8x6xf32>,
    return
  }
  func.func @transform_0(%arg0: i32) -> (i32, i32) {
    %c0_i32 = arith.constant 0 : i32
    %c0_i32_0 = arith.constant 0 : i32
    return %arg0, %c0_i32 : i32, i32
  }
  func.func @transform_1(%arg0: i32) -> (i32, i32) {
    %c0_i32 = arith.constant 0 : i32
    %c0_i32_0 = arith.constant 0 : i32
    %c0_i32_1 = arith.constant 0 : i32
    return %c0_i32, %c0_i32_0 : i32, i32
  }
  func.func @transform_2(%arg0: i32) -> (i32, i32) {
    %c0_i32 = arith.constant 0 : i32
    %c0_i32_0 = arith.constant 0 : i32
    %c0_i32_1 = arith.constant 0 : i32
    return %c0_i32, %c0_i32_0 : i32, i32
  }
  func.func @transform_3(%arg0: i32) -> (i32, i32) {
    %c0_i32 = arith.constant 0 : i32
    %c0_i32_0 = arith.constant 0 : i32
    %c0_i32_1 = arith.constant 0 : i32
    return %c0_i32, %c0_i32_0 : i32, i32
  }
  func.func @transform_4(%arg0: i32) -> (i32, i32) {
    %c0_i32 = arith.constant 0 : i32
    %c0_i32_0 = arith.constant 0 : i32
    %c0_i32_1 = arith.constant 0 : i32
    return %c0_i32, %c0_i32_0 : i32, i32
  }
  func.func @transform_5(%arg0: i32) -> (i32, i32) {
    %c0_i32 = arith.constant 0 : i32
    %c0_i32_0 = arith.constant 0 : i32
    return %arg0, %c0_i32 : i32, i32
  }
}

</mosaic_0001>

<llo_original>
// kernel: camera_classifier_forward.1
$region0: #{camera_classifier_forward.1}
  #allocation0 [shape = 'u32[]', space=smem, size = 0x4, offset = 0x4, fixed_abs, tag = 'smem constant byte address 0x4 - core index']
  #allocation1 [shape = 'u32[144,128]{1,0:T(1,128)}', space=vmem, size = 0x12000, scoped, tag = 'internal scratch']
  %s0 = inlined_call_operand.hbm [shape: bf16[8,2048], index: 0, kind: input, shape index: {}]
  %s1 = inlined_call_operand.hbm [shape: bf16[2048,128], index: 1, kind: input, shape index: {}]
  %s2 = inlined_call_operand.hbm [shape: f32[1,128], index: 2, kind: input, shape index: {}]
  %s3 = inlined_call_operand.hbm [shape: f32[128,6], index: 3, kind: input, shape index: {}]
  %s4 = inlined_call_operand.hbm [shape: f32[1,6], index: 4, kind: input, shape index: {}]
  %s5 = inlined_call_operand.hbm [shape: f32[8,6], index: 5, kind: output, shape index: {}]
  %s6 = sld [smem:[#allocation0]]
  $region50: #{camera_classifier_forward.1} parent=0
    _
  %s8 = ssub.s32 1, %s6
  %s9 = scalar_select 0, %s8, %s6
  $region1: #{camera_classifier_forward.1} parent=0
    #allocation2 [shape = 'u8[32768]{0}', space=vmem, size = 0x8000, scoped, tag = 'input window, operand 0, single buffered']
    #allocation3 [shape = 's32[1]{0}', space=sflag, size = 0x4, scoped, tag = 'scoped memory for camera_classifier_forward.1']
    #allocation4 [shape = 's32[1]{0}', space=sflag, size = 0x4, scoped, tag = 'scoped memory for camera_classifier_forward.1']
    #allocation5 [shape = 'u8[524288]{0}', space=vmem, size = 0x80000, scoped, tag = 'input window, operand 1, single buffered']
    #allocation6 [shape = 's32[1]{0}', space=sflag, size = 0x4, scoped, tag = 'scoped memory for camera_classifier_forward.1']
    #allocation7 [shape = 'u8[512]{0}', space=vmem, size = 0x400, scoped, tag = 'input window, operand 2, single buffered']
    #allocation8 [shape = 'u8[65536]{0}', space=vmem, size = 0x10000, scoped, tag = 'input window, operand 3, single buffered']
    #allocation9 [shape = 's32[1]{0}', space=sflag, size = 0x4, scoped, tag = 'scoped memory for camera_classifier_forward.1']
    #allocation10 [shape = 'u8[512]{0}', space=vmem, size = 0x400, scoped, tag = 'input window, operand 4, single buffered']
    #allocation11 [shape = 'u8[4096]{0}', space=vmem, size = 0x1000, scoped, tag = 'output window, operand 0, single buffered']
    %10 = vsyncpa [#allocation3], 0
    %11 = vsyncpa [#allocation6], 0
    %12 = vsyncpa [#allocation9], 0
    %13 = vsyncpa [#allocation4], 0
    // Predicated region
    $region2: #{camera_classifier_forward.1} parent=1 // pred_check
      _
    $region3: #{camera_classifier_forward.1} parent=1 // pred_check_branch
      %15 = sbr.rel (0) target = $region5
    $region4: #{camera_classifier_forward.1} parent=1 // pred_region
      %s17 = ssub.s32 1024, 1024
      %18 = vsyncadd [#allocation3], %s17
      %s20 = sshll.u32 [#allocation2], 4
      %s21 = int_to_ptr.vmem [resolvable:$true] %s20
      %23 = dma.hbm_to_vmem [thread:$0]  %s0, 1024, %s21, [#allocation3]
    $region5: #{camera_classifier_forward.1} parent=1 // pred_fallthru
      _
    // Predicated region
    $region6: #{camera_classifier_forward.1} parent=1 // pred_check
      _
    $region7: #{camera_classifier_forward.1} parent=1 // pred_check_branch
      %25 = sbr.rel (0) target = $region9
    $region8: #{camera_classifier_forward.1} parent=1 // pred_region
      %s27 = ssub.s32 16384, 16384
      %28 = vsyncadd [#allocation6], %s27
      %s29 = sshll.u32 [#allocation5], 4
      %s30 = int_to_ptr.vmem [resolvable:$true] %s29
      %35 = dma.hbm_to_vmem [thread:$0]  %s1, 16384, %s30, [#allocation6], 64, 64, 4
    $region9: #{camera_classifier_forward.1} parent=1 // pred_fallthru
      _
    // Predicated region
    $region10: #{camera_classifier_forward.1} parent=1 // pred_check
      _
    $region11: #{camera_classifier_forward.1} parent=1 // pred_check_branch
      %37 = sbr.rel (0) target = $region13
    $region12: #{camera_classifier_forward.1} parent=1 // pred_region
      %s39 = ssub.s32 16, 16
      %40 = vsyncadd [#allocation6], %s39
      %s42 = sshll.u32 [#allocation7], 4
      %s43 = int_to_ptr.vmem [resolvable:$true] %s42
      %45 = dma.hbm_to_vmem [thread:$0]  %s2, 16, %s43, [#allocation6]
    $region13: #{camera_classifier_forward.1} parent=1 // pred_fallthru
      _
    // Predicated region
    $region14: #{camera_classifier_forward.1} parent=1 // pred_check
      _
    $region15: #{camera_classifier_forward.1} parent=1 // pred_check_branch
      %47 = sbr.rel (0) target = $region17
    $region16: #{camera_classifier_forward.1} parent=1 // pred_region
      %s49 = ssub.s32 2048, 2048
      %50 = vsyncadd [#allocation9], %s49
      %s51 = sshll.u32 [#allocation8], 4
      %s52 = int_to_ptr.vmem [resolvable:$true] %s51
      %57 = dma.hbm_to_vmem [thread:$0]  %s3, 2048, %s52, [#allocation9], 128, 128, 8
    $region17: #{camera_classifier_forward.1} parent=1 // pred_fallthru
      _
    // Predicated region
    $region18: #{camera_classifier_forward.1} parent=1 // pred_check
      _
    $region19: #{camera_classifier_forward.1} parent=1 // pred_check_branch
      %59 = sbr.rel (0) target = $region21
    $region20: #{camera_classifier_forward.1} parent=1 // pred_region
      %s61 = ssub.s32 16, 16
      %62 = vsyncadd [#allocation9], %s61
      %s64 = sshll.u32 [#allocation10], 4
      %s65 = int_to_ptr.vmem [resolvable:$true] %s64
      %67 = dma.hbm_to_vmem [thread:$0]  %s4, 16, %s65, [#allocation9]
    $region21: #{camera_classifier_forward.1} parent=1 // pred_fallthru
      _
    // Predicated region
    $region22: #{camera_classifier_forward.1} parent=1 // pred_check
      _
    $region23: #{camera_classifier_forward.1} parent=1 // pred_check_branch
      %69 = sbr.rel (0) target = $region25
    $region24: #{camera_classifier_forward.1} parent=1 // pred_region
      %70 = dma.done [#allocation3], 1024
    $region25: #{camera_classifier_forward.1} parent=1 // pred_fallthru
      _
    // Predicated region
    $region26: #{camera_classifier_forward.1} parent=1 // pred_check
      _
    $region27: #{camera_classifier_forward.1} parent=1 // pred_check_branch
      %72 = sbr.rel (0) target = $region29
    $region28: #{camera_classifier_forward.1} parent=1 // pred_region
      %73 = dma.done [#allocation6], 16384
    $region29: #{camera_classifier_forward.1} parent=1 // pred_fallthru
      _
    // Predicated region
    $region30: #{camera_classifier_forward.1} parent=1 // pred_check
      _
    $region31: #{camera_classifier_forward.1} parent=1 // pred_check_branch
      %75 = sbr.rel (0) target = $region33
    $region32: #{camera_classifier_forward.1} parent=1 // pred_region
      %76 = dma.done [#allocation6], 16
    $region33: #{camera_classifier_forward.1} parent=1 // pred_fallthru
      _
    // Predicated region
    $region34: #{camera_classifier_forward.1} parent=1 // pred_check
      _
    $region35: #{camera_classifier_forward.1} parent=1 // pred_check_branch
      %78 = sbr.rel (0) target = $region37
    $region36: #{camera_classifier_forward.1} parent=1 // pred_region
      %79 = dma.done [#allocation9], 2048
    $region37: #{camera_classifier_forward.1} parent=1 // pred_fallthru
      _
    // Predicated region
    $region38: #{camera_classifier_forward.1} parent=1 // pred_check
      _
    $region39: #{camera_classifier_forward.1} parent=1 // pred_check_branch
      %81 = sbr.rel (0) target = $region41
    $region40: #{camera_classifier_forward.1} parent=1 // pred_region
      %82 = dma.done [#allocation9], 16
    $region41: #{camera_classifier_forward.1} parent=1 // pred_fallthru
      _
    %v84 = vld [vmem:[#allocation2] sm:$0xff]
    %v85 = vld [vmem:[#allocation2 + $0x8] sm:$0xff]
    %v86 = vld [vmem:[#allocation2 + $0x10] sm:$0xff]
    %v87 = vld [vmem:[#allocation2 + $0x18] sm:$0xff]
    %v88 = vld [vmem:[#allocation2 + $0x20] sm:$0xff]
    %v89 = vld [vmem:[#allocation2 + $0x28] sm:$0xff]
    %v90 = vld [vmem:[#allocation2 + $0x30] sm:$0xff]
    %v91 = vld [vmem:[#allocation2 + $0x38] sm:$0xff]
    %v92 = vld [vmem:[#allocation5] sm:$0xf]
    %v93 = vld [vmem:[#allocation5 + $0x4] sm:$0xf]
    %v94 = vld [vmem:[#allocation5 + $0x8] sm:$0xf]
    %v95 = vld [vmem:[#allocation5 + $0xc] sm:$0xf]
    %v96 = vld [vmem:[#allocation5 + $0x10] sm:$0xf]
    %v97 = vld [vmem:[#allocation5 + $0x14] sm:$0xf]
    %v98 = vld [vmem:[#allocation5 + $0x18] sm:$0xf]
    %v99 = vld [vmem:[#allocation5 + $0x1c] sm:$0xf]
    %v100 = vld [vmem:[#allocation5 + $0x20] sm:$0xf]
    %v101 = vld [vmem:[#allocation5 + $0x24] sm:$0xf]
    %v102 = vld [vmem:[#allocation5 + $0x28] sm:$0xf]
    %v103 = vld [vmem:[#allocation5 + $0x2c] sm:$0xf]
    %v104 = vld [vmem:[#allocation5 + $0x30] sm:$0xf]
    %v105 = vld [vmem:[#allocation5 + $0x34] sm:$0xf]
    %v106 = vld [vmem:[#allocation5 + $0x38] sm:$0xf]
    %v107 = vld [vmem:[#allocation5 + $0x3c] sm:$0xf]
    %v108 = vld [vmem:[#allocation5 + $0x40] sm:$0xf]
    %v109 = vld [vmem:[#allocation5 + $0x44] sm:$0xf]
    %v110 = vld [vmem:[#allocation5 + $0x48] sm:$0xf]
    %v111 = vld [vmem:[#allocation5 + $0x4c] sm:$0xf]
    %v112 = vld [vmem:[#allocation5 + $0x50] sm:$0xf]
    %v113 = vld [vmem:[#allocation5 + $0x54] sm:$0xf]
    %v114 = vld [vmem:[#allocation5 + $0x58] sm:$0xf]
    %v115 = vld [vmem:[#allocation5 + $0x5c] sm:$0xf]
    %v116 = vld [vmem:[#allocation5 + $0x60] sm:$0xf]
    %v117 = vld [vmem:[#allocation5 + $0x64] sm:$0xf]
    %v118 = vld [vmem:[#allocation5 + $0x68] sm:$0xf]
    %v119 = vld [vmem:[#allocation5 + $0x6c] sm:$0xf]
    %v120 = vld [vmem:[#allocation5 + $0x70] sm:$0xf]
    %v121 = vld [vmem:[#allocation5 + $0x74] sm:$0xf]
    %v122 = vld [vmem:[#allocation5 + $0x78] sm:$0xf]
    %v123 = vld [vmem:[#allocation5 + $0x7c] sm:$0xf]
    %v124 = vld [vmem:[#allocation5 + $0x80] sm:$0xf]
    %v125 = vld [vmem:[#allocation5 + $0x84] sm:$0xf]
    %v126 = vld [vmem:[#allocation5 + $0x88] sm:$0xf]
    %v127 = vld [vmem:[#allocation5 + $0x8c] sm:$0xf]
    %v128 = vld [vmem:[#allocation5 + $0x90] sm:$0xf]
    %v129 = vld [vmem:[#allocation5 + $0x94] sm:$0xf]
    %v130 = vld [vmem:[#allocation5 + $0x98] sm:$0xf]
    %v131 = vld [vmem:[#allocation5 + $0x9c] sm:$0xf]
    %v132 = vld [vmem:[#allocation5 + $0xa0] sm:$0xf]
    %v133 = vld [vmem:[#allocation5 + $0xa4] sm:$0xf]
    %v134 = vld [vmem:[#allocation5 + $0xa8] sm:$0xf]
    %v135 = vld [vmem:[#allocation5 + $0xac] sm:$0xf]
    %v136 = vld [vmem:[#allocation5 + $0xb0] sm:$0xf]
    %v137 = vld [vmem:[#allocation5 + $0xb4] sm:$0xf]
    %v138 = vld [vmem:[#allocation5 + $0xb8] sm:$0xf]
    %v139 = vld [vmem:[#allocation5 + $0xbc] sm:$0xf]
    %v140 = vld [vmem:[#allocation5 + $0xc0] sm:$0xf]
    %v141 = vld [vmem:[#allocation5 + $0xc4] sm:$0xf]
    %v142 = vld [vmem:[#allocation5 + $0xc8] sm:$0xf]
    %v143 = vld [vmem:[#allocation5 + $0xcc] sm:$0xf]
    %v144 = vld [vmem:[#allocation5 + $0xd0] sm:$0xf]
    %v145 = vld [vmem:[#allocation5 + $0xd4] sm:$0xf]
    %v146 = vld [vmem:[#allocation5 + $0xd8] sm:$0xf]
    %v147 = vld [vmem:[#allocation5 + $0xdc] sm:$0xf]
    %v148 = vld [vmem:[#allocation5 + $0xe0] sm:$0xf]
    %v149 = vld [vmem:[#allocation5 + $0xe4] sm:$0xf]
    %v150 = vld [vmem:[#allocation5 + $0xe8] sm:$0xf]
    %v151 = vld [vmem:[#allocation5 + $0xec] sm:$0xf]
    %v152 = vld [vmem:[#allocation5 + $0xf0] sm:$0xf]
    %v153 = vld [vmem:[#allocation5 + $0xf4] sm:$0xf]
    %v154 = vld [vmem:[#allocation5 + $0xf8] sm:$0xf]
    %v155 = vld [vmem:[#allocation5 + $0xfc] sm:$0xf]
    %v156 = vld [vmem:[#allocation5 + $0x100] sm:$0xf]
    %v157 = vld [vmem:[#allocation5 + $0x104] sm:$0xf]
    %v158 = vld [vmem:[#allocation5 + $0x108] sm:$0xf]
    %v159 = vld [vmem:[#allocation5 + $0x10c] sm:$0xf]
    %v160 = vld [vmem:[#allocation5 + $0x110] sm:$0xf]
    %v161 = vld [vmem:[#allocation5 + $0x114] sm:$0xf]
    %v162 = vld [vmem:[#allocation5 + $0x118] sm:$0xf]
    %v163 = vld [vmem:[#allocation5 + $0x11c] sm:$0xf]
    %v164 = vld [vmem:[#allocation5 + $0x120] sm:$0xf]
    %v165 = vld [vmem:[#allocation5 + $0x124] sm:$0xf]
    %v166 = vld [vmem:[#allocation5 + $0x128] sm:$0xf]
    %v167 = vld [vmem:[#allocation5 + $0x12c] sm:$0xf]
    %v168 = vld [vmem:[#allocation5 + $0x130] sm:$0xf]
    %v169 = vld [vmem:[#allocation5 + $0x134] sm:$0xf]
    %v170 = vld [vmem:[#allocation5 + $0x138] sm:$0xf]
    %v171 = vld [vmem:[#allocation5 + $0x13c] sm:$0xf]
    %v172 = vld [vmem:[#allocation5 + $0x140] sm:$0xf]
    %v173 = vld [vmem:[#allocation5 + $0x144] sm:$0xf]
    %v174 = vld [vmem:[#allocation5 + $0x148] sm:$0xf]
    %v175 = vld [vmem:[#allocation5 + $0x14c] sm:$0xf]
    %v176 = vld [vmem:[#allocation5 + $0x150] sm:$0xf]
    %v177 = vld [vmem:[#allocation5 + $0x154] sm:$0xf]
    %v178 = vld [vmem:[#allocation5 + $0x158] sm:$0xf]
    %v179 = vld [vmem:[#allocation5 + $0x15c] sm:$0xf]
    %v180 = vld [vmem:[#allocation5 + $0x160] sm:$0xf]
    %v181 = vld [vmem:[#allocation5 + $0x164] sm:$0xf]
    %v182 = vld [vmem:[#allocation5 + $0x168] sm:$0xf]
    %v183 = vld [vmem:[#allocation5 + $0x16c] sm:$0xf]
    %v184 = vld [vmem:[#allocation5 + $0x170] sm:$0xf]
    %v185 = vld [vmem:[#allocation5 + $0x174] sm:$0xf]
    %v186 = vld [vmem:[#allocation5 + $0x178] sm:$0xf]
    %v187 = vld [vmem:[#allocation5 + $0x17c] sm:$0xf]
    %v188 = vld [vmem:[#allocation5 + $0x180] sm:$0xf]
    %v189 = vld [vmem:[#allocation5 + $0x184] sm:$0xf]
    %v190 = vld [vmem:[#allocation5 + $0x188] sm:$0xf]
    %v191 = vld [vmem:[#allocation5 + $0x18c] sm:$0xf]
    %v192 = vld [vmem:[#allocation5 + $0x190] sm:$0xf]
    %v193 = vld [vmem:[#allocation5 + $0x194] sm:$0xf]
    %v194 = vld [vmem:[#allocation5 + $0x198] sm:$0xf]
    %v195 = vld [vmem:[#allocation5 + $0x19c] sm:$0xf]
    %v196 = vld [vmem:[#allocation5 + $0x1a0] sm:$0xf]
    %v197 = vld [vmem:[#allocation5 + $0x1a4] sm:$0xf]
    %v198 = vld [vmem:[#allocation5 + $0x1a8] sm:$0xf]
    %v199 = vld [vmem:[#allocation5 + $0x1ac] sm:$0xf]
    %v200 = vld [vmem:[#allocation5 + $0x1b0] sm:$0xf]
    %v201 = vld [vmem:[#allocation5 + $0x1b4] sm:$0xf]
    %v202 = vld [vmem:[#allocation5 + $0x1b8] sm:$0xf]
    %v203 = vld [vmem:[#allocation5 + $0x1bc] sm:$0xf]
    %v204 = vld [vmem:[#allocation5 + $0x1c0] sm:$0xf]
    %v205 = vld [vmem:[#allocation5 + $0x1c4] sm:$0xf]
    %v206 = vld [vmem:[#allocation5 + $0x1c8] sm:$0xf]
    %v207 = vld [vmem:[#allocation5 + $0x1cc] sm:$0xf]
    %v208 = vld [vmem:[#allocation5 + $0x1d0] sm:$0xf]
    %v209 = vld [vmem:[#allocation5 + $0x1d4] sm:$0xf]
    %v210 = vld [vmem:[#allocation5 + $0x1d8] sm:$0xf]
    %v211 = vld [vmem:[#allocation5 + $0x1dc] sm:$0xf]
    %v212 = vld [vmem:[#allocation5 + $0x1e0] sm:$0xf]
    %v213 = vld [vmem:[#allocation5 + $0x1e4] sm:$0xf]
    %v214 = vld [vmem:[#allocation5 + $0x1e8] sm:$0xf]
    %v215 = vld [vmem:[#allocation5 + $0x1ec] sm:$0xf]
    %v216 = vld [vmem:[#allocation5 + $0x1f0] sm:$0xf]
    %v217 = vld [vmem:[#allocation5 + $0x1f4] sm:$0xf]
    %v218 = vld [vmem:[#allocation5 + $0x1f8] sm:$0xf]
    %v219 = vld [vmem:[#allocation5 + $0x1fc] sm:$0xf]
    %v220 = vld [vmem:[#allocation5 + $0x200] sm:$0xf]
    %v221 = vld [vmem:[#allocation5 + $0x204] sm:$0xf]
    %v222 = vld [vmem:[#allocation5 + $0x208] sm:$0xf]
    %v223 = vld [vmem:[#allocation5 + $0x20c] sm:$0xf]
    %v224 = vld [vmem:[#allocation5 + $0x210] sm:$0xf]
    %v225 = vld [vmem:[#allocation5 + $0x214] sm:$0xf]
    %v226 = vld [vmem:[#allocation5 + $0x218] sm:$0xf]
    %v227 = vld [vmem:[#allocation5 + $0x21c] sm:$0xf]
    %v228 = vld [vmem:[#allocation5 + $0x220] sm:$0xf]
    %v229 = vld [vmem:[#allocation5 + $0x224] sm:$0xf]
    %v230 = vld [vmem:[#allocation5 + $0x228] sm:$0xf]
    %v231 = vld [vmem:[#allocation5 + $0x22c] sm:$0xf]
    %v232 = vld [vmem:[#allocation5 + $0x230] sm:$0xf]
    %v233 = vld [vmem:[#allocation5 + $0x234] sm:$0xf]
    %v234 = vld [vmem:[#allocation5 + $0x238] sm:$0xf]
    %v235 = vld [vmem:[#allocation5 + $0x23c] sm:$0xf]
    %v236 = vld [vmem:[#allocation5 + $0x240] sm:$0xf]
    %v237 = vld [vmem:[#allocation5 + $0x244] sm:$0xf]
    %v238 = vld [vmem:[#allocation5 + $0x248] sm:$0xf]
    %v239 = vld [vmem:[#allocation5 + $0x24c] sm:$0xf]
    %v240 = vld [vmem:[#allocation5 + $0x250] sm:$0xf]
    %v241 = vld [vmem:[#allocation5 + $0x254] sm:$0xf]
    %v242 = vld [vmem:[#allocation5 + $0x258] sm:$0xf]
    %v243 = vld [vmem:[#allocation5 + $0x25c] sm:$0xf]
    %v244 = vld [vmem:[#allocation5 + $0x260] sm:$0xf]
    %v245 = vld [vmem:[#allocation5 + $0x264] sm:$0xf]
    %v246 = vld [vmem:[#allocation5 + $0x268] sm:$0xf]
    %v247 = vld [vmem:[#allocation5 + $0x26c] sm:$0xf]
    %v248 = vld [vmem:[#allocation5 + $0x270] sm:$0xf]
    %v249 = vld [vmem:[#allocation5 + $0x274] sm:$0xf]
    %v250 = vld [vmem:[#allocation5 + $0x278] sm:$0xf]
    %v251 = vld [vmem:[#allocation5 + $0x27c] sm:$0xf]
    %v252 = vld [vmem:[#allocation5 + $0x280] sm:$0xf]
    %v253 = vld [vmem:[#allocation5 + $0x284] sm:$0xf]
    %v254 = vld [vmem:[#allocation5 + $0x288] sm:$0xf]
    %v255 = vld [vmem:[#allocation5 + $0x28c] sm:$0xf]
    %v256 = vld [vmem:[#allocation5 + $0x290] sm:$0xf]
    %v257 = vld [vmem:[#allocation5 + $0x294] sm:$0xf]
    %v258 = vld [vmem:[#allocation5 + $0x298] sm:$0xf]
    %v259 = vld [vmem:[#allocation5 + $0x29c] sm:$0xf]
    %v260 = vld [vmem:[#allocation5 + $0x2a0] sm:$0xf]
    %v261 = vld [vmem:[#allocation5 + $0x2a4] sm:$0xf]
    %v262 = vld [vmem:[#allocation5 + $0x2a8] sm:$0xf]
    %v263 = vld [vmem:[#allocation5 + $0x2ac] sm:$0xf]
    %v264 = vld [vmem:[#allocation5 + $0x2b0] sm:$0xf]
    %v265 = vld [vmem:[#allocation5 + $0x2b4] sm:$0xf]
    %v266 = vld [vmem:[#allocation5 + $0x2b8] sm:$0xf]
    %v267 = vld [vmem:[#allocation5 + $0x2bc] sm:$0xf]
    %v268 = vld [vmem:[#allocation5 + $0x2c0] sm:$0xf]
    %v269 = vld [vmem:[#allocation5 + $0x2c4] sm:$0xf]
    %v270 = vld [vmem:[#allocation5 + $0x2c8] sm:$0xf]
    %v271 = vld [vmem:[#allocation5 + $0x2cc] sm:$0xf]
    %v272 = vld [vmem:[#allocation5 + $0x2d0] sm:$0xf]
    %v273 = vld [vmem:[#allocation5 + $0x2d4] sm:$0xf]
    %v274 = vld [vmem:[#allocation5 + $0x2d8] sm:$0xf]
    %v275 = vld [vmem:[#allocation5 + $0x2dc] sm:$0xf]
    %v276 = vld [vmem:[#allocation5 + $0x2e0] sm:$0xf]
    %v277 = vld [vmem:[#allocation5 + $0x2e4] sm:$0xf]
    %v278 = vld [vmem:[#allocation5 + $0x2e8] sm:$0xf]
    %v279 = vld [vmem:[#allocation5 + $0x2ec] sm:$0xf]
    %v280 = vld [vmem:[#allocation5 + $0x2f0] sm:$0xf]
    %v281 = vld [vmem:[#allocation5 + $0x2f4] sm:$0xf]
    %v282 = vld [vmem:[#allocation5 + $0x2f8] sm:$0xf]
    %v283 = vld [vmem:[#allocation5 + $0x2fc] sm:$0xf]
    %v284 = vld [vmem:[#allocation5 + $0x300] sm:$0xf]
    %v285 = vld [vmem:[#allocation5 + $0x304] sm:$0xf]
    %v286 = vld [vmem:[#allocation5 + $0x308] sm:$0xf]
    %v287 = vld [vmem:[#allocation5 + $0x30c] sm:$0xf]
    %v288 = vld [vmem:[#allocation5 + $0x310] sm:$0xf]
    %v289 = vld [vmem:[#allocation5 + $0x314] sm:$0xf]
    %v290 = vld [vmem:[#allocation5 + $0x318] sm:$0xf]
    %v291 = vld [vmem:[#allocation5 + $0x31c] sm:$0xf]
    %v292 = vld [vmem:[#allocation5 + $0x320] sm:$0xf]
    %v293 = vld [vmem:[#allocation5 + $0x324] sm:$0xf]
    %v294 = vld [vmem:[#allocation5 + $0x328] sm:$0xf]
    %v295 = vld [vmem:[#allocation5 + $0x32c] sm:$0xf]
    %v296 = vld [vmem:[#allocation5 + $0x330] sm:$0xf]
    %v297 = vld [vmem:[#allocation5 + $0x334] sm:$0xf]
    %v298 = vld [vmem:[#allocation5 + $0x338] sm:$0xf]
    %v299 = vld [vmem:[#allocation5 + $0x33c] sm:$0xf]
    %v300 = vld [vmem:[#allocation5 + $0x340] sm:$0xf]
    %v301 = vld [vmem:[#allocation5 + $0x344] sm:$0xf]
    %v302 = vld [vmem:[#allocation5 + $0x348] sm:$0xf]
    %v303 = vld [vmem:[#allocation5 + $0x34c] sm:$0xf]
    %v304 = vld [vmem:[#allocation5 + $0x350] sm:$0xf]
    %v305 = vld [vmem:[#allocation5 + $0x354] sm:$0xf]
    %v306 = vld [vmem:[#allocation5 + $0x358] sm:$0xf]
    %v307 = vld [vmem:[#allocation5 + $0x35c] sm:$0xf]
    %v308 = vld [vmem:[#allocation5 + $0x360] sm:$0xf]
    %v309 = vld [vmem:[#allocation5 + $0x364] sm:$0xf]
    %v310 = vld [vmem:[#allocation5 + $0x368] sm:$0xf]
    %v311 = vld [vmem:[#allocation5 + $0x36c] sm:$0xf]
    %v312 = vld [vmem:[#allocation5 + $0x370] sm:$0xf]
    %v313 = vld [vmem:[#allocation5 + $0x374] sm:$0xf]
    %v314 = vld [vmem:[#allocation5 + $0x378] sm:$0xf]
    %v315 = vld [vmem:[#allocation5 + $0x37c] sm:$0xf]
    %v316 = vld [vmem:[#allocation5 + $0x380] sm:$0xf]
    %v317 = vld [vmem:[#allocation5 + $0x384] sm:$0xf]
    %v318 = vld [vmem:[#allocation5 + $0x388] sm:$0xf]
    %v319 = vld [vmem:[#allocation5 + $0x38c] sm:$0xf]
    %v320 = vld [vmem:[#allocation5 + $0x390] sm:$0xf]
    %v321 = vld [vmem:[#allocation5 + $0x394] sm:$0xf]
    %v322 = vld [vmem:[#allocation5 + $0x398] sm:$0xf]
    %v323 = vld [vmem:[#allocation5 + $0x39c] sm:$0xf]
    %v324 = vld [vmem:[#allocation5 + $0x3a0] sm:$0xf]
    %v325 = vld [vmem:[#allocation5 + $0x3a4] sm:$0xf]
    %v326 = vld [vmem:[#allocation5 + $0x3a8] sm:$0xf]
    %v327 = vld [vmem:[#allocation5 + $0x3ac] sm:$0xf]
    %v328 = vld [vmem:[#allocation5 + $0x3b0] sm:$0xf]
    %v329 = vld [vmem:[#allocation5 + $0x3b4] sm:$0xf]
    %v330 = vld [vmem:[#allocation5 + $0x3b8] sm:$0xf]
    %v331 = vld [vmem:[#allocation5 + $0x3bc] sm:$0xf]
    %v332 = vld [vmem:[#allocation5 + $0x3c0] sm:$0xf]
    %v333 = vld [vmem:[#allocation5 + $0x3c4] sm:$0xf]
    %v334 = vld [vmem:[#allocation5 + $0x3c8] sm:$0xf]
    %v335 = vld [vmem:[#allocation5 + $0x3cc] sm:$0xf]
    %v336 = vld [vmem:[#allocation5 + $0x3d0] sm:$0xf]
    %v337 = vld [vmem:[#allocation5 + $0x3d4] sm:$0xf]
    %v338 = vld [vmem:[#allocation5 + $0x3d8] sm:$0xf]
    %v339 = vld [vmem:[#allocation5 + $0x3dc] sm:$0xf]
    %v340 = vld [vmem:[#allocation5 + $0x3e0] sm:$0xf]
    %v341 = vld [vmem:[#allocation5 + $0x3e4] sm:$0xf]
    %v342 = vld [vmem:[#allocation5 + $0x3e8] sm:$0xf]
    %v343 = vld [vmem:[#allocation5 + $0x3ec] sm:$0xf]
    %v344 = vld [vmem:[#allocation5 + $0x3f0] sm:$0xf]
    %v345 = vld [vmem:[#allocation5 + $0x3f4] sm:$0xf]
    %v346 = vld [vmem:[#allocation5 + $0x3f8] sm:$0xf]
    %v347 = vld [vmem:[#allocation5 + $0x3fc] sm:$0xf]
    %v348 = vld [vmem:[#allocation7] sm:$0x1]
    %v350 = vlaneseq
    %v351 = vshrl.u32 %v350, 7
    %v352 = vsub.s32 0, %v351
    %v353 = vrot.slane %v348, %v352
    %v363 = vunpack.c.l.b16 %v84
    %v364 = vunpack.c.h.b16 %v84
    %v365 = vunpack.c.l.b16 %v85
    %v366 = vunpack.c.h.b16 %v85
    %v367 = vunpack.c.l.b16 %v86
    %v368 = vunpack.c.h.b16 %v86
    %v369 = vunpack.c.l.b16 %v87
    %v370 = vunpack.c.h.b16 %v87
    %v371 = vunpack.c.l.b16 %v88
    %v372 = vunpack.c.h.b16 %v88
    %v373 = vunpack.c.l.b16 %v89
    %v374 = vunpack.c.h.b16 %v89
    %v375 = vunpack.c.l.b16 %v90
    %v376 = vunpack.c.h.b16 %v90
    %v377 = vunpack.c.l.b16 %v91
    %v378 = vunpack.c.h.b16 %v91
    %v379 = vpack.c.b16 %v363, %v363
    %v380 = vpack.c.b16 %v364, %v364
    %v381 = vpack.c.b16 %v365, %v365
    %v382 = vpack.c.b16 %v366, %v366
    %v383 = vpack.c.b16 %v367, %v367
    %v384 = vpack.c.b16 %v368, %v368
    %v385 = vpack.c.b16 %v369, %v369
    %v386 = vpack.c.b16 %v370, %v370
    %v387 = vpack.c.b16 %v371, %v371
    %v388 = vpack.c.b16 %v372, %v372
    %v389 = vpack.c.b16 %v373, %v373
    %v390 = vpack.c.b16 %v374, %v374
    %v391 = vpack.c.b16 %v375, %v375
    %v392 = vpack.c.b16 %v376, %v376
    %v393 = vpack.c.b16 %v377, %v377
    %v394 = vpack.c.b16 %v378, %v378
    %v667 = vunpack.c.l.b16 %v92
    %v668 = vunpack.c.l.b16 %v93
    %v669 = vunpack.c.l.b16 %v94
    %v670 = vunpack.c.l.b16 %v95
    %v671 = vunpack.c.l.b16 %v96
    %v672 = vunpack.c.l.b16 %v97
    %v673 = vunpack.c.l.b16 %v98
    %v674 = vunpack.c.l.b16 %v99
    %v675 = vunpack.c.l.b16 %v100
    %v676 = vunpack.c.l.b16 %v101
    %v677 = vunpack.c.l.b16 %v102
    %v678 = vunpack.c.l.b16 %v103
    %v679 = vunpack.c.l.b16 %v104
    %v680 = vunpack.c.l.b16 %v105
    %v681 = vunpack.c.l.b16 %v106
    %v682 = vunpack.c.l.b16 %v107
    %v683 = vunpack.c.l.b16 %v108
    %v684 = vunpack.c.l.b16 %v109
    %v685 = vunpack.c.l.b16 %v110
    %v686 = vunpack.c.l.b16 %v111
    %v687 = vunpack.c.l.b16 %v112
    %v688 = vunpack.c.l.b16 %v113
    %v689 = vunpack.c.l.b16 %v114
    %v690 = vunpack.c.l.b16 %v115
    %v691 = vunpack.c.l.b16 %v116
    %v692 = vunpack.c.l.b16 %v117
    %v693 = vunpack.c.l.b16 %v118
    %v694 = vunpack.c.l.b16 %v119
    %v695 = vunpack.c.l.b16 %v120
    %v696 = vunpack.c.l.b16 %v121
    %v697 = vunpack.c.l.b16 %v122
    %v698 = vunpack.c.l.b16 %v123
    %v699 = vunpack.c.l.b16 %v124
    %v700 = vunpack.c.l.b16 %v125
    %v701 = vunpack.c.l.b16 %v126
    %v702 = vunpack.c.l.b16 %v127
    %v703 = vunpack.c.l.b16 %v128
    %v704 = vunpack.c.l.b16 %v129
    %v705 = vunpack.c.l.b16 %v130
    %v706 = vunpack.c.l.b16 %v131
    %v707 = vunpack.c.l.b16 %v132
    %v708 = vunpack.c.l.b16 %v133
    %v709 = vunpack.c.l.b16 %v134
    %v710 = vunpack.c.l.b16 %v135
    %v711 = vunpack.c.l.b16 %v136
    %v712 = vunpack.c.l.b16 %v137
    %v713 = vunpack.c.l.b16 %v138
    %v714 = vunpack.c.l.b16 %v139
    %v715 = vunpack.c.l.b16 %v140
    %v716 = vunpack.c.l.b16 %v141
    %v717 = vunpack.c.l.b16 %v142
    %v718 = vunpack.c.l.b16 %v143
    %v719 = vunpack.c.l.b16 %v144
    %v720 = vunpack.c.l.b16 %v145
    %v721 = vunpack.c.l.b16 %v146
    %v722 = vunpack.c.l.b16 %v147
    %v723 = vunpack.c.l.b16 %v148
    %v724 = vunpack.c.l.b16 %v149
    %v725 = vunpack.c.l.b16 %v150
    %v726 = vunpack.c.l.b16 %v151
    %v727 = vunpack.c.l.b16 %v152
    %v728 = vunpack.c.l.b16 %v153
    %v729 = vunpack.c.l.b16 %v154
    %v730 = vunpack.c.l.b16 %v155
    %v731 = vunpack.c.l.b16 %v156
    %v732 = vunpack.c.l.b16 %v157
    %v733 = vunpack.c.l.b16 %v158
    %v734 = vunpack.c.l.b16 %v159
    %v735 = vunpack.c.l.b16 %v160
    %v736 = vunpack.c.l.b16 %v161
    %v737 = vunpack.c.l.b16 %v162
    %v738 = vunpack.c.l.b16 %v163
    %v739 = vunpack.c.l.b16 %v164
    %v740 = vunpack.c.l.b16 %v165
    %v741 = vunpack.c.l.b16 %v166
    %v742 = vunpack.c.l.b16 %v167
    %v743 = vunpack.c.l.b16 %v168
    %v744 = vunpack.c.l.b16 %v169
    %v745 = vunpack.c.l.b16 %v170
    %v746 = vunpack.c.l.b16 %v171
    %v747 = vunpack.c.l.b16 %v172
    %v748 = vunpack.c.l.b16 %v173
    %v749 = vunpack.c.l.b16 %v174
    %v750 = vunpack.c.l.b16 %v175
    %v751 = vunpack.c.l.b16 %v176
    %v752 = vunpack.c.l.b16 %v177
    %v753 = vunpack.c.l.b16 %v178
    %v754 = vunpack.c.l.b16 %v179
    %v755 = vunpack.c.l.b16 %v180
    %v756 = vunpack.c.l.b16 %v181
    %v757 = vunpack.c.l.b16 %v182
    %v758 = vunpack.c.l.b16 %v183
    %v759 = vunpack.c.l.b16 %v184
    %v760 = vunpack.c.l.b16 %v185
    %v761 = vunpack.c.l.b16 %v186
    %v762 = vunpack.c.l.b16 %v187
    %v763 = vunpack.c.l.b16 %v188
    %v764 = vunpack.c.l.b16 %v189
    %v765 = vunpack.c.l.b16 %v190
    %v766 = vunpack.c.l.b16 %v191
    %v767 = vunpack.c.l.b16 %v192
    %v768 = vunpack.c.l.b16 %v193
    %v769 = vunpack.c.l.b16 %v194
    %v770 = vunpack.c.l.b16 %v195
    %v771 = vunpack.c.l.b16 %v196
    %v772 = vunpack.c.l.b16 %v197
    %v773 = vunpack.c.l.b16 %v198
    %v774 = vunpack.c.l.b16 %v199
    %v775 = vunpack.c.l.b16 %v200
    %v776 = vunpack.c.l.b16 %v201
    %v777 = vunpack.c.l.b16 %v202
    %v778 = vunpack.c.l.b16 %v203
    %v779 = vunpack.c.l.b16 %v204
    %v780 = vunpack.c.l.b16 %v205
    %v781 = vunpack.c.l.b16 %v206
    %v782 = vunpack.c.l.b16 %v207
    %v783 = vunpack.c.l.b16 %v208
    %v784 = vunpack.c.l.b16 %v209
    %v785 = vunpack.c.l.b16 %v210
    %v786 = vunpack.c.l.b16 %v211
    %v787 = vunpack.c.l.b16 %v212
    %v788 = vunpack.c.l.b16 %v213
    %v789 = vunpack.c.l.b16 %v214
    %v790 = vunpack.c.l.b16 %v215
    %v791 = vunpack.c.l.b16 %v216
    %v792 = vunpack.c.l.b16 %v217
    %v793 = vunpack.c.l.b16 %v218
    %v794 = vunpack.c.l.b16 %v219
    %v795 = vunpack.c.l.b16 %v220
    %v796 = vunpack.c.l.b16 %v221
    %v797 = vunpack.c.l.b16 %v222
    %v798 = vunpack.c.l.b16 %v223
    %v799 = vunpack.c.l.b16 %v224
    %v800 = vunpack.c.l.b16 %v225
    %v801 = vunpack.c.l.b16 %v226
    %v802 = vunpack.c.l.b16 %v227
    %v803 = vunpack.c.l.b16 %v228
    %v804 = vunpack.c.l.b16 %v229
    %v805 = vunpack.c.l.b16 %v230
    %v806 = vunpack.c.l.b16 %v231
    %v807 = vunpack.c.l.b16 %v232
    %v808 = vunpack.c.l.b16 %v233
    %v809 = vunpack.c.l.b16 %v234
    %v810 = vunpack.c.l.b16 %v235
    %v811 = vunpack.c.l.b16 %v236
    %v812 = vunpack.c.l.b16 %v237
    %v813 = vunpack.c.l.b16 %v238
    %v814 = vunpack.c.l.b16 %v239
    %v815 = vunpack.c.l.b16 %v240
    %v816 = vunpack.c.l.b16 %v241
    %v817 = vunpack.c.l.b16 %v242
    %v818 = vunpack.c.l.b16 %v243
    %v819 = vunpack.c.l.b16 %v244
    %v820 = vunpack.c.l.b16 %v245
    %v821 = vunpack.c.l.b16 %v246
    %v822 = vunpack.c.l.b16 %v247
    %v823 = vunpack.c.l.b16 %v248
    %v824 = vunpack.c.l.b16 %v249
    %v825 = vunpack.c.l.b16 %v250
    %v826 = vunpack.c.l.b16 %v251
    %v827 = vunpack.c.l.b16 %v252
    %v828 = vunpack.c.l.b16 %v253
    %v829 = vunpack.c.l.b16 %v254
    %v830 = vunpack.c.l.b16 %v255
    %v831 = vunpack.c.l.b16 %v256
    %v832 = vunpack.c.l.b16 %v257
    %v833 = vunpack.c.l.b16 %v258
    %v834 = vunpack.c.l.b16 %v259
    %v835 = vunpack.c.l.b16 %v260
    %v836 = vunpack.c.l.b16 %v261
    %v837 = vunpack.c.l.b16 %v262
    %v838 = vunpack.c.l.b16 %v263
    %v839 = vunpack.c.l.b16 %v264
    %v840 = vunpack.c.l.b16 %v265
    %v841 = vunpack.c.l.b16 %v266
    %v842 = vunpack.c.l.b16 %v267
    %v843 = vunpack.c.l.b16 %v268
    %v844 = vunpack.c.l.b16 %v269
    %v845 = vunpack.c.l.b16 %v270
    %v846 = vunpack.c.l.b16 %v271
    %v847 = vunpack.c.l.b16 %v272
    %v848 = vunpack.c.l.b16 %v273
    %v849 = vunpack.c.l.b16 %v274
    %v850 = vunpack.c.l.b16 %v275
    %v851 = vunpack.c.l.b16 %v276
    %v852 = vunpack.c.l.b16 %v277
    %v853 = vunpack.c.l.b16 %v278
    %v854 = vunpack.c.l.b16 %v279
    %v855 = vunpack.c.l.b16 %v280
    %v856 = vunpack.c.l.b16 %v281
    %v857 = vunpack.c.l.b16 %v282
    %v858 = vunpack.c.l.b16 %v283
    %v859 = vunpack.c.l.b16 %v284
    %v860 = vunpack.c.l.b16 %v285
    %v861 = vunpack.c.l.b16 %v286
    %v862 = vunpack.c.l.b16 %v287
    %v863 = vunpack.c.l.b16 %v288
    %v864 = vunpack.c.l.b16 %v289
    %v865 = vunpack.c.l.b16 %v290
    %v866 = vunpack.c.l.b16 %v291
    %v867 = vunpack.c.l.b16 %v292
    %v868 = vunpack.c.l.b16 %v293
    %v869 = vunpack.c.l.b16 %v294
    %v870 = vunpack.c.l.b16 %v295
    %v871 = vunpack.c.l.b16 %v296
    %v872 = vunpack.c.l.b16 %v297
    %v873 = vunpack.c.l.b16 %v298
    %v874 = vunpack.c.l.b16 %v299
    %v875 = vunpack.c.l.b16 %v300
    %v876 = vunpack.c.l.b16 %v301
    %v877 = vunpack.c.l.b16 %v302
    %v878 = vunpack.c.l.b16 %v303
    %v879 = vunpack.c.l.b16 %v304
    %v880 = vunpack.c.l.b16 %v305
    %v881 = vunpack.c.l.b16 %v306
    %v882 = vunpack.c.l.b16 %v307
    %v883 = vunpack.c.l.b16 %v308
    %v884 = vunpack.c.l.b16 %v309
    %v885 = vunpack.c.l.b16 %v310
    %v886 = vunpack.c.l.b16 %v311
    %v887 = vunpack.c.l.b16 %v312
    %v888 = vunpack.c.l.b16 %v313
    %v889 = vunpack.c.l.b16 %v314
    %v890 = vunpack.c.l.b16 %v315
    %v891 = vunpack.c.l.b16 %v316
    %v892 = vunpack.c.l.b16 %v317
    %v893 = vunpack.c.l.b16 %v318
    %v894 = vunpack.c.l.b16 %v319
    %v895 = vunpack.c.l.b16 %v320
    %v896 = vunpack.c.l.b16 %v321
    %v897 = vunpack.c.l.b16 %v322
    %v898 = vunpack.c.l.b16 %v323
    %v899 = vunpack.c.l.b16 %v324
    %v900 = vunpack.c.l.b16 %v325
    %v901 = vunpack.c.l.b16 %v326
    %v902 = vunpack.c.l.b16 %v327
    %v903 = vunpack.c.l.b16 %v328
    %v904 = vunpack.c.l.b16 %v329
    %v905 = vunpack.c.l.b16 %v330
    %v906 = vunpack.c.l.b16 %v331
    %v907 = vunpack.c.l.b16 %v332
    %v908 = vunpack.c.l.b16 %v333
    %v909 = vunpack.c.l.b16 %v334
    %v910 = vunpack.c.l.b16 %v335
    %v911 = vunpack.c.l.b16 %v336
    %v912 = vunpack.c.l.b16 %v337
    %v913 = vunpack.c.l.b16 %v338
    %v914 = vunpack.c.l.b16 %v339
    %v915 = vunpack.c.l.b16 %v340
    %v916 = vunpack.c.l.b16 %v341
    %v917 = vunpack.c.l.b16 %v342
    %v918 = vunpack.c.l.b16 %v343
    %v919 = vunpack.c.l.b16 %v344
    %v920 = vunpack.c.l.b16 %v345
    %v921 = vunpack.c.l.b16 %v346
    %v922 = vunpack.c.l.b16 %v347
    %v923 = vpack.c.b16 %v668, %v667
    %v924 = vpack.c.b16 %v670, %v669
    %v925 = vpack.c.b16 %v672, %v671
    %v926 = vpack.c.b16 %v674, %v673
    %v927 = vpack.c.b16 %v676, %v675
    %v928 = vpack.c.b16 %v678, %v677
    %v929 = vpack.c.b16 %v680, %v679
    %v930 = vpack.c.b16 %v682, %v681
    %v931 = vpack.c.b16 %v684, %v683
    %v932 = vpack.c.b16 %v686, %v685
    %v933 = vpack.c.b16 %v688, %v687
    %v934 = vpack.c.b16 %v690, %v689
    %v935 = vpack.c.b16 %v692, %v691
    %v936 = vpack.c.b16 %v694, %v693
    %v937 = vpack.c.b16 %v696, %v695
    %v938 = vpack.c.b16 %v698, %v697
    %v939 = vpack.c.b16 %v700, %v699
    %v940 = vpack.c.b16 %v702, %v701
    %v941 = vpack.c.b16 %v704, %v703
    %v942 = vpack.c.b16 %v706, %v705
    %v943 = vpack.c.b16 %v708, %v707
    %v944 = vpack.c.b16 %v710, %v709
    %v945 = vpack.c.b16 %v712, %v711
    %v946 = vpack.c.b16 %v714, %v713
    %v947 = vpack.c.b16 %v716, %v715
    %v948 = vpack.c.b16 %v718, %v717
    %v949 = vpack.c.b16 %v720, %v719
    %v950 = vpack.c.b16 %v722, %v721
    %v951 = vpack.c.b16 %v724, %v723
    %v952 = vpack.c.b16 %v726, %v725
    %v953 = vpack.c.b16 %v728, %v727
    %v954 = vpack.c.b16 %v730, %v729
    %v955 = vpack.c.b16 %v732, %v731
    %v956 = vpack.c.b16 %v734, %v733
    %v957 = vpack.c.b16 %v736, %v735
    %v958 = vpack.c.b16 %v738, %v737
    %v959 = vpack.c.b16 %v740, %v739
    %v960 = vpack.c.b16 %v742, %v741
    %v961 = vpack.c.b16 %v744, %v743
    %v962 = vpack.c.b16 %v746, %v745
    %v963 = vpack.c.b16 %v748, %v747
    %v964 = vpack.c.b16 %v750, %v749
    %v965 = vpack.c.b16 %v752, %v751
    %v966 = vpack.c.b16 %v754, %v753
    %v967 = vpack.c.b16 %v756, %v755
    %v968 = vpack.c.b16 %v758, %v757
    %v969 = vpack.c.b16 %v760, %v759
    %v970 = vpack.c.b16 %v762, %v761
    %v971 = vpack.c.b16 %v764, %v763
    %v972 = vpack.c.b16 %v766, %v765
    %v973 = vpack.c.b16 %v768, %v767
    %v974 = vpack.c.b16 %v770, %v769
    %v975 = vpack.c.b16 %v772, %v771
    %v976 = vpack.c.b16 %v774, %v773
    %v977 = vpack.c.b16 %v776, %v775
    %v978 = vpack.c.b16 %v778, %v777
    %v979 = vpack.c.b16 %v780, %v779
    %v980 = vpack.c.b16 %v782, %v781
    %v981 = vpack.c.b16 %v784, %v783
    %v982 = vpack.c.b16 %v786, %v785
    %v983 = vpack.c.b16 %v788, %v787
    %v984 = vpack.c.b16 %v790, %v789
    %v985 = vpack.c.b16 %v792, %v791
    %v986 = vpack.c.b16 %v794, %v793
    %v987 = vpack.c.b16 %v796, %v795
    %v988 = vpack.c.b16 %v798, %v797
    %v989 = vpack.c.b16 %v800, %v799
    %v990 = vpack.c.b16 %v802, %v801
    %v991 = vpack.c.b16 %v804, %v803
    %v992 = vpack.c.b16 %v806, %v805
    %v993 = vpack.c.b16 %v808, %v807
    %v994 = vpack.c.b16 %v810, %v809
    %v995 = vpack.c.b16 %v812, %v811
    %v996 = vpack.c.b16 %v814, %v813
    %v997 = vpack.c.b16 %v816, %v815
    %v998 = vpack.c.b16 %v818, %v817
    %v999 = vpack.c.b16 %v820, %v819
    %v1000 = vpack.c.b16 %v822, %v821
    %v1001 = vpack.c.b16 %v824, %v823
    %v1002 = vpack.c.b16 %v826, %v825
    %v1003 = vpack.c.b16 %v828, %v827
    %v1004 = vpack.c.b16 %v830, %v829
    %v1005 = vpack.c.b16 %v832, %v831
    %v1006 = vpack.c.b16 %v834, %v833
    %v1007 = vpack.c.b16 %v836, %v835
    %v1008 = vpack.c.b16 %v838, %v837
    %v1009 = vpack.c.b16 %v840, %v839
    %v1010 = vpack.c.b16 %v842, %v841
    %v1011 = vpack.c.b16 %v844, %v843
    %v1012 = vpack.c.b16 %v846, %v845
    %v1013 = vpack.c.b16 %v848, %v847
    %v1014 = vpack.c.b16 %v850, %v849
    %v1015 = vpack.c.b16 %v852, %v851
    %v1016 = vpack.c.b16 %v854, %v853
    %v1017 = vpack.c.b16 %v856, %v855
    %v1018 = vpack.c.b16 %v858, %v857
    %v1019 = vpack.c.b16 %v860, %v859
    %v1020 = vpack.c.b16 %v862, %v861
    %v1021 = vpack.c.b16 %v864, %v863
    %v1022 = vpack.c.b16 %v866, %v865
    %v1023 = vpack.c.b16 %v868, %v867
    %v1024 = vpack.c.b16 %v870, %v869
    %v1025 = vpack.c.b16 %v872, %v871
    %v1026 = vpack.c.b16 %v874, %v873
    %v1027 = vpack.c.b16 %v876, %v875
    %v1028 = vpack.c.b16 %v878, %v877
    %v1029 = vpack.c.b16 %v880, %v879
    %v1030 = vpack.c.b16 %v882, %v881
    %v1031 = vpack.c.b16 %v884, %v883
    %v1032 = vpack.c.b16 %v886, %v885
    %v1033 = vpack.c.b16 %v888, %v887
    %v1034 = vpack.c.b16 %v890, %v889
    %v1035 = vpack.c.b16 %v892, %v891
    %v1036 = vpack.c.b16 %v894, %v893
    %v1037 = vpack.c.b16 %v896, %v895
    %v1038 = vpack.c.b16 %v898, %v897
    %v1039 = vpack.c.b16 %v900, %v899
    %v1040 = vpack.c.b16 %v902, %v901
    %v1041 = vpack.c.b16 %v904, %v903
    %v1042 = vpack.c.b16 %v906, %v905
    %v1043 = vpack.c.b16 %v908, %v907
    %v1044 = vpack.c.b16 %v910, %v909
    %v1045 = vpack.c.b16 %v912, %v911
    %v1046 = vpack.c.b16 %v914, %v913
    %v1047 = vpack.c.b16 %v916, %v915
    %v1048 = vpack.c.b16 %v918, %v917
    %v1049 = vpack.c.b16 %v920, %v919
    %v1050 = vpack.c.b16 %v922, %v921
    %1179 = vmatprep.subr.bf16.mxu0 0
    %1180 = vmatpush1.bf16.msra.mxu0 %v923
    %1181 = vmatprep.subr.bf16.mxu0 0
    %1182 = vmatpush1.bf16.msra.mxu0 %v924
    %1183 = vmatprep.subr.bf16.mxu0 0
    %1184 = vmatpush1.bf16.msra.mxu0 %v925
    %1185 = vmatprep.subr.bf16.mxu0 0
    %1186 = vmatpush1.bf16.msra.mxu0 %v926
    %1187 = vmatprep.subr.bf16.mxu0 0
    %1188 = vmatpush1.bf16.msra.mxu0 %v927
    %1189 = vmatprep.subr.bf16.mxu0 0
    %1190 = vmatpush1.bf16.msra.mxu0 %v928
    %1191 = vmatprep.subr.bf16.mxu0 0
    %1192 = vmatpush1.bf16.msra.mxu0 %v929
    %1193 = vmatprep.subr.bf16.mxu0 0
    %1194 = vmatpush1.bf16.msra.mxu0 %v930
    %1195 = vmatprep.subr.bf16.mxu0 0
    %1196 = vmatpush1.bf16.msra.mxu0 %v931
    %1197 = vmatprep.subr.bf16.mxu0 0
    %1198 = vmatpush1.bf16.msra.mxu0 %v932
    %1199 = vmatprep.subr.bf16.mxu0 0
    %1200 = vmatpush1.bf16.msra.mxu0 %v933
    %1201 = vmatprep.subr.bf16.mxu0 0
    %1202 = vmatpush1.bf16.msra.mxu0 %v934
    %1203 = vmatprep.subr.bf16.mxu0 0
    %1204 = vmatpush1.bf16.msra.mxu0 %v935
    %1205 = vmatprep.subr.bf16.mxu0 0
    %1206 = vmatpush1.bf16.msra.mxu0 %v936
    %1207 = vmatprep.subr.bf16.mxu0 0
    %1208 = vmatpush1.bf16.msra.mxu0 %v937
    %1209 = vmatprep.subr.bf16.mxu0 0
    %1210 = vmatpush1.bf16.msra.mxu0 %v938
    %1211 = vmatprep.mubr.bf16.mxu0 %v380
    %1212 = vmatmul.mubr.bf16.gmra.mrb[0].mxu0 %v379
    %v1213 = vpop.f32.mrb[0].mxu0
    %v1214 = vadd.f32 %v353, %v1213
    %v1215 = vpop.f32.mrb[0].mxu0
    %v1216 = vpop.f32.mrb[0].mxu0
    %v1217 = vpop.f32.mrb[0].mxu0
    %1218 = vdwg.mxu0
    %1219 = vmatprep.subr.bf16.mxu0 0
    %1220 = vmatpush1.bf16.msra.mxu0 %v939
    %1221 = vmatprep.subr.bf16.mxu0 0
    %1222 = vmatpush1.bf16.msra.mxu0 %v940
    %1223 = vmatprep.subr.bf16.mxu0 0
    %1224 = vmatpush1.bf16.msra.mxu0 %v941
    %1225 = vmatprep.subr.bf16.mxu0 0
    %1226 = vmatpush1.bf16.msra.mxu0 %v942
    %1227 = vmatprep.subr.bf16.mxu0 0
    %1228 = vmatpush1.bf16.msra.mxu0 %v943
    %1229 = vmatprep.subr.bf16.mxu0 0
    %1230 = vmatpush1.bf16.msra.mxu0 %v944
    %1231 = vmatprep.subr.bf16.mxu0 0
    %1232 = vmatpush1.bf16.msra.mxu0 %v945
    %1233 = vmatprep.subr.bf16.mxu0 0
    %1234 = vmatpush1.bf16.msra.mxu0 %v946
    %1235 = vmatprep.subr.bf16.mxu0 0
    %1236 = vmatpush1.bf16.msra.mxu0 %v947
    %1237 = vmatprep.subr.bf16.mxu0 0
    %1238 = vmatpush1.bf16.msra.mxu0 %v948
    %1239 = vmatprep.subr.bf16.mxu0 0
    %1240 = vmatpush1.bf16.msra.mxu0 %v949
    %1241 = vmatprep.subr.bf16.mxu0 0
    %1242 = vmatpush1.bf16.msra.mxu0 %v950
    %1243 = vmatprep.subr.bf16.mxu0 0
    %1244 = vmatpush1.bf16.msra.mxu0 %v951
    %1245 = vmatprep.subr.bf16.mxu0 0
    %1246 = vmatpush1.bf16.msra.mxu0 %v952
    %1247 = vmatprep.subr.bf16.mxu0 0
    %1248 = vmatpush1.bf16.msra.mxu0 %v953
    %1249 = vmatprep.subr.bf16.mxu0 0
    %1250 = vmatpush1.bf16.msra.mxu0 %v954
    %1251 = vmatprep.mubr.bf16.mxu0 %v382
    %1252 = vmatmul.mubr.bf16.gmra.mrb[0].mxu0 %v381
    %v1253 = vpop.f32.mrb[0].mxu0
    %v1254 = vadd.f32 %v1214, %v1253
    %v1255 = vpop.f32.mrb[0].mxu0
    %v1256 = vpop.f32.mrb[0].mxu0
    %v1257 = vpop.f32.mrb[0].mxu0
    %1258 = vdwg.mxu0
    %1259 = vmatprep.subr.bf16.mxu0 0
    %1260 = vmatpush1.bf16.msra.mxu0 %v955
    %1261 = vmatprep.subr.bf16.mxu0 0
    %1262 = vmatpush1.bf16.msra.mxu0 %v956
    %1263 = vmatprep.subr.bf16.mxu0 0
    %1264 = vmatpush1.bf16.msra.mxu0 %v957
    %1265 = vmatprep.subr.bf16.mxu0 0
    %1266 = vmatpush1.bf16.msra.mxu0 %v958
    %1267 = vmatprep.subr.bf16.mxu0 0
    %1268 = vmatpush1.bf16.msra.mxu0 %v959
    %1269 = vmatprep.subr.bf16.mxu0 0
    %1270 = vmatpush1.bf16.msra.mxu0 %v960
    %1271 = vmatprep.subr.bf16.mxu0 0
    %1272 = vmatpush1.bf16.msra.mxu0 %v961
    %1273 = vmatprep.subr.bf16.mxu0 0
    %1274 = vmatpush1.bf16.msra.mxu0 %v962
    %1275 = vmatprep.subr.bf16.mxu0 0
    %1276 = vmatpush1.bf16.msra.mxu0 %v963
    %1277 = vmatprep.subr.bf16.mxu0 0
    %1278 = vmatpush1.bf16.msra.mxu0 %v964
    %1279 = vmatprep.subr.bf16.mxu0 0
    %1280 = vmatpush1.bf16.msra.mxu0 %v965
    %1281 = vmatprep.subr.bf16.mxu0 0
    %1282 = vmatpush1.bf16.msra.mxu0 %v966
    %1283 = vmatprep.subr.bf16.mxu0 0
    %1284 = vmatpush1.bf16.msra.mxu0 %v967
    %1285 = vmatprep.subr.bf16.mxu0 0
    %1286 = vmatpush1.bf16.msra.mxu0 %v968
    %1287 = vmatprep.subr.bf16.mxu0 0
    %1288 = vmatpush1.bf16.msra.mxu0 %v969
    %1289 = vmatprep.subr.bf16.mxu0 0
    %1290 = vmatpush1.bf16.msra.mxu0 %v970
    %1291 = vmatprep.mubr.bf16.mxu0 %v384
    %1292 = vmatmul.mubr.bf16.gmra.mrb[0].mxu0 %v383
    %v1293 = vpop.f32.mrb[0].mxu0
    %v1294 = vadd.f32 %v1254, %v1293
    %v1295 = vpop.f32.mrb[0].mxu0
    %v1296 = vpop.f32.mrb[0].mxu0
    %v1297 = vpop.f32.mrb[0].mxu0
    %1298 = vdwg.mxu0
    %1299 = vmatprep.subr.bf16.mxu0 0
    %1300 = vmatpush1.bf16.msra.mxu0 %v971
    %1301 = vmatprep.subr.bf16.mxu0 0
    %1302 = vmatpush1.bf16.msra.mxu0 %v972
    %1303 = vmatprep.subr.bf16.mxu0 0
    %1304 = vmatpush1.bf16.msra.mxu0 %v973
    %1305 = vmatprep.subr.bf16.mxu0 0
    %1306 = vmatpush1.bf16.msra.mxu0 %v974
    %1307 = vmatprep.subr.bf16.mxu0 0
    %1308 = vmatpush1.bf16.msra.mxu0 %v975
    %1309 = vmatprep.subr.bf16.mxu0 0
    %1310 = vmatpush1.bf16.msra.mxu0 %v976
    %1311 = vmatprep.subr.bf16.mxu0 0
    %1312 = vmatpush1.bf16.msra.mxu0 %v977
    %1313 = vmatprep.subr.bf16.mxu0 0
    %1314 = vmatpush1.bf16.msra.mxu0 %v978
    %1315 = vmatprep.subr.bf16.mxu0 0
    %1316 = vmatpush1.bf16.msra.mxu0 %v979
    %1317 = vmatprep.subr.bf16.mxu0 0
    %1318 = vmatpush1.bf16.msra.mxu0 %v980
    %1319 = vmatprep.subr.bf16.mxu0 0
    %1320 = vmatpush1.bf16.msra.mxu0 %v981
    %1321 = vmatprep.subr.bf16.mxu0 0
    %1322 = vmatpush1.bf16.msra.mxu0 %v982
    %1323 = vmatprep.subr.bf16.mxu0 0
    %1324 = vmatpush1.bf16.msra.mxu0 %v983
    %1325 = vmatprep.subr.bf16.mxu0 0
    %1326 = vmatpush1.bf16.msra.mxu0 %v984
    %1327 = vmatprep.subr.bf16.mxu0 0
    %1328 = vmatpush1.bf16.msra.mxu0 %v985
    %1329 = vmatprep.subr.bf16.mxu0 0
    %1330 = vmatpush1.bf16.msra.mxu0 %v986
    %1331 = vmatprep.mubr.bf16.mxu0 %v386
    %1332 = vmatmul.mubr.bf16.gmra.mrb[0].mxu0 %v385
    %v1333 = vpop.f32.mrb[0].mxu0
    %v1334 = vadd.f32 %v1294, %v1333
    %v1335 = vpop.f32.mrb[0].mxu0
    %v1336 = vpop.f32.mrb[0].mxu0
    %v1337 = vpop.f32.mrb[0].mxu0
    %1338 = vdwg.mxu0
    %1339 = vmatprep.subr.bf16.mxu0 0
    %1340 = vmatpush1.bf16.msra.mxu0 %v987
    %1341 = vmatprep.subr.bf16.mxu0 0
    %1342 = vmatpush1.bf16.msra.mxu0 %v988
    %1343 = vmatprep.subr.bf16.mxu0 0
    %1344 = vmatpush1.bf16.msra.mxu0 %v989
    %1345 = vmatprep.subr.bf16.mxu0 0
    %1346 = vmatpush1.bf16.msra.mxu0 %v990
    %1347 = vmatprep.subr.bf16.mxu0 0
    %1348 = vmatpush1.bf16.msra.mxu0 %v991
    %1349 = vmatprep.subr.bf16.mxu0 0
    %1350 = vmatpush1.bf16.msra.mxu0 %v992
    %1351 = vmatprep.subr.bf16.mxu0 0
    %1352 = vmatpush1.bf16.msra.mxu0 %v993
    %1353 = vmatprep.subr.bf16.mxu0 0
    %1354 = vmatpush1.bf16.msra.mxu0 %v994
    %1355 = vmatprep.subr.bf16.mxu0 0
    %1356 = vmatpush1.bf16.msra.mxu0 %v995
    %1357 = vmatprep.subr.bf16.mxu0 0
    %1358 = vmatpush1.bf16.msra.mxu0 %v996
    %1359 = vmatprep.subr.bf16.mxu0 0
    %1360 = vmatpush1.bf16.msra.mxu0 %v997
    %1361 = vmatprep.subr.bf16.mxu0 0
    %1362 = vmatpush1.bf16.msra.mxu0 %v998
    %1363 = vmatprep.subr.bf16.mxu0 0
    %1364 = vmatpush1.bf16.msra.mxu0 %v999
    %1365 = vmatprep.subr.bf16.mxu0 0
    %1366 = vmatpush1.bf16.msra.mxu0 %v1000
    %1367 = vmatprep.subr.bf16.mxu0 0
    %1368 = vmatpush1.bf16.msra.mxu0 %v1001
    %1369 = vmatprep.subr.bf16.mxu0 0
    %1370 = vmatpush1.bf16.msra.mxu0 %v1002
    %1371 = vmatprep.mubr.bf16.mxu0 %v388
    %1372 = vmatmul.mubr.bf16.gmra.mrb[0].mxu0 %v387
    %v1373 = vpop.f32.mrb[0].mxu0
    %v1374 = vadd.f32 %v1334, %v1373
    %v1375 = vpop.f32.mrb[0].mxu0
    %v1376 = vpop.f32.mrb[0].mxu0
    %v1377 = vpop.f32.mrb[0].mxu0
    %1378 = vdwg.mxu0
    %1379 = vmatprep.subr.bf16.mxu0 0
    %1380 = vmatpush1.bf16.msra.mxu0 %v1003
    %1381 = vmatprep.subr.bf16.mxu0 0
    %1382 = vmatpush1.bf16.msra.mxu0 %v1004
    %1383 = vmatprep.subr.bf16.mxu0 0
    %1384 = vmatpush1.bf16.msra.mxu0 %v1005
    %1385 = vmatprep.subr.bf16.mxu0 0
    %1386 = vmatpush1.bf16.msra.mxu0 %v1006
    %1387 = vmatprep.subr.bf16.mxu0 0
    %1388 = vmatpush1.bf16.msra.mxu0 %v1007
    %1389 = vmatprep.subr.bf16.mxu0 0
    %1390 = vmatpush1.bf16.msra.mxu0 %v1008
    %1391 = vmatprep.subr.bf16.mxu0 0
    %1392 = vmatpush1.bf16.msra.mxu0 %v1009
    %1393 = vmatprep.subr.bf16.mxu0 0
    %1394 = vmatpush1.bf16.msra.mxu0 %v1010
    %1395 = vmatprep.subr.bf16.mxu0 0
    %1396 = vmatpush1.bf16.msra.mxu0 %v1011
    %1397 = vmatprep.subr.bf16.mxu0 0
    %1398 = vmatpush1.bf16.msra.mxu0 %v1012
    %1399 = vmatprep.subr.bf16.mxu0 0
    %1400 = vmatpush1.bf16.msra.mxu0 %v1013
    %1401 = vmatprep.subr.bf16.mxu0 0
    %1402 = vmatpush1.bf16.msra.mxu0 %v1014
    %1403 = vmatprep.subr.bf16.mxu0 0
    %1404 = vmatpush1.bf16.msra.mxu0 %v1015
    %1405 = vmatprep.subr.bf16.mxu0 0
    %1406 = vmatpush1.bf16.msra.mxu0 %v1016
    %1407 = vmatprep.subr.bf16.mxu0 0
    %1408 = vmatpush1.bf16.msra.mxu0 %v1017
    %1409 = vmatprep.subr.bf16.mxu0 0
    %1410 = vmatpush1.bf16.msra.mxu0 %v1018
    %1411 = vmatprep.mubr.bf16.mxu0 %v390
    %1412 = vmatmul.mubr.bf16.gmra.mrb[0].mxu0 %v389
    %v1413 = vpop.f32.mrb[0].mxu0
    %v1414 = vadd.f32 %v1374, %v1413
    %v1415 = vpop.f32.mrb[0].mxu0
    %v1416 = vpop.f32.mrb[0].mxu0
    %v1417 = vpop.f32.mrb[0].mxu0
    %1418 = vdwg.mxu0
    %1419 = vmatprep.subr.bf16.mxu0 0
    %1420 = vmatpush1.bf16.msra.mxu0 %v1019
    %1421 = vmatprep.subr.bf16.mxu0 0
    %1422 = vmatpush1.bf16.msra.mxu0 %v1020
    %1423 = vmatprep.subr.bf16.mxu0 0
    %1424 = vmatpush1.bf16.msra.mxu0 %v1021
    %1425 = vmatprep.subr.bf16.mxu0 0
    %1426 = vmatpush1.bf16.msra.mxu0 %v1022
    %1427 = vmatprep.subr.bf16.mxu0 0
    %1428 = vmatpush1.bf16.msra.mxu0 %v1023
    %1429 = vmatprep.subr.bf16.mxu0 0
    %1430 = vmatpush1.bf16.msra.mxu0 %v1024
    %1431 = vmatprep.subr.bf16.mxu0 0
    %1432 = vmatpush1.bf16.msra.mxu0 %v1025
    %1433 = vmatprep.subr.bf16.mxu0 0
    %1434 = vmatpush1.bf16.msra.mxu0 %v1026
    %1435 = vmatprep.subr.bf16.mxu0 0
    %1436 = vmatpush1.bf16.msra.mxu0 %v1027
    %1437 = vmatprep.subr.bf16.mxu0 0
    %1438 = vmatpush1.bf16.msra.mxu0 %v1028
    %1439 = vmatprep.subr.bf16.mxu0 0
    %1440 = vmatpush1.bf16.msra.mxu0 %v1029
    %1441 = vmatprep.subr.bf16.mxu0 0
    %1442 = vmatpush1.bf16.msra.mxu0 %v1030
    %1443 = vmatprep.subr.bf16.mxu0 0
    %1444 = vmatpush1.bf16.msra.mxu0 %v1031
    %1445 = vmatprep.subr.bf16.mxu0 0
    %1446 = vmatpush1.bf16.msra.mxu0 %v1032
    %1447 = vmatprep.subr.bf16.mxu0 0
    %1448 = vmatpush1.bf16.msra.mxu0 %v1033
    %1449 = vmatprep.subr.bf16.mxu0 0
    %1450 = vmatpush1.bf16.msra.mxu0 %v1034
    %1451 = vmatprep.mubr.bf16.mxu0 %v392
    %1452 = vmatmul.mubr.bf16.gmra.mrb[0].mxu0 %v391
    %v1453 = vpop.f32.mrb[0].mxu0
    %v1454 = vadd.f32 %v1414, %v1453
    %v1455 = vpop.f32.mrb[0].mxu0
    %v1456 = vpop.f32.mrb[0].mxu0
    %v1457 = vpop.f32.mrb[0].mxu0
    %1458 = vdwg.mxu0
    %1459 = vmatprep.subr.bf16.mxu0 0
    %1460 = vmatpush1.bf16.msra.mxu0 %v1035
    %1461 = vmatprep.subr.bf16.mxu0 0
    %1462 = vmatpush1.bf16.msra.mxu0 %v1036
    %1463 = vmatprep.subr.bf16.mxu0 0
    %1464 = vmatpush1.bf16.msra.mxu0 %v1037
    %1465 = vmatprep.subr.bf16.mxu0 0
    %1466 = vmatpush1.bf16.msra.mxu0 %v1038
    %1467 = vmatprep.subr.bf16.mxu0 0
    %1468 = vmatpush1.bf16.msra.mxu0 %v1039
    %1469 = vmatprep.subr.bf16.mxu0 0
    %1470 = vmatpush1.bf16.msra.mxu0 %v1040
    %1471 = vmatprep.subr.bf16.mxu0 0
    %1472 = vmatpush1.bf16.msra.mxu0 %v1041
    %1473 = vmatprep.subr.bf16.mxu0 0
    %1474 = vmatpush1.bf16.msra.mxu0 %v1042
    %1475 = vmatprep.subr.bf16.mxu0 0
    %1476 = vmatpush1.bf16.msra.mxu0 %v1043
    %1477 = vmatprep.subr.bf16.mxu0 0
    %1478 = vmatpush1.bf16.msra.mxu0 %v1044
    %1479 = vmatprep.subr.bf16.mxu0 0
    %1480 = vmatpush1.bf16.msra.mxu0 %v1045
    %1481 = vmatprep.subr.bf16.mxu0 0
    %1482 = vmatpush1.bf16.msra.mxu0 %v1046
    %1483 = vmatprep.subr.bf16.mxu0 0
    %1484 = vmatpush1.bf16.msra.mxu0 %v1047
    %1485 = vmatprep.subr.bf16.mxu0 0
    %1486 = vmatpush1.bf16.msra.mxu0 %v1048
    %1487 = vmatprep.subr.bf16.mxu0 0
    %1488 = vmatpush1.bf16.msra.mxu0 %v1049
    %1489 = vmatprep.subr.bf16.mxu0 0
    %1490 = vmatpush1.bf16.msra.mxu0 %v1050
    %1491 = vmatprep.mubr.bf16.mxu0 %v394
    %1492 = vmatmul.mubr.bf16.gmra.mrb[0].mxu0 %v393
    %v1493 = vpop.f32.mrb[0].mxu0
    %v1494 = vadd.f32 %v1454, %v1493
    %v1495 = vpop.f32.mrb[0].mxu0
    %v1496 = vpop.f32.mrb[0].mxu0
    %v1497 = vpop.f32.mrb[0].mxu0
    %1498 = vdwg.mxu0
    %v1499 = vmax.f32 %v1494, 0.0
    %v1500 = vld [vmem:[#allocation8] sm:$0xff]
    %v1501 = vld [vmem:[#allocation8 + $0x8] sm:$0xff]
    %v1502 = vld [vmem:[#allocation8 + $0x10] sm:$0xff]
    %v1503 = vld [vmem:[#allocation8 + $0x18] sm:$0xff]
    %v1504 = vld [vmem:[#allocation8 + $0x20] sm:$0xff]
    %v1505 = vld [vmem:[#allocation8 + $0x28] sm:$0xff]
    %v1506 = vld [vmem:[#allocation8 + $0x30] sm:$0xff]
    %v1507 = vld [vmem:[#allocation8 + $0x38] sm:$0xff]
    %v1508 = vld [vmem:[#allocation8 + $0x40] sm:$0xff]
    %v1509 = vld [vmem:[#allocation8 + $0x48] sm:$0xff]
    %v1510 = vld [vmem:[#allocation8 + $0x50] sm:$0xff]
    %v1511 = vld [vmem:[#allocation8 + $0x58] sm:$0xff]
    %v1512 = vld [vmem:[#allocation8 + $0x60] sm:$0xff]
    %v1513 = vld [vmem:[#allocation8 + $0x68] sm:$0xff]
    %v1514 = vld [vmem:[#allocation8 + $0x70] sm:$0xff]
    %v1515 = vld [vmem:[#allocation8 + $0x78] sm:$0xff]
    %v1516 = vld [vmem:[#allocation10] sm:$0x1]
    %v1518 = vlaneseq
    %v1519 = vshrl.u32 %v1518, 7
    %v1520 = vsub.s32 0, %v1519
    %v1521 = vrot.slane %v1516, %v1520
    %1523 = vmatprep.subr.mxu0 0.0
    %1524 = vmatpush1.msra.mxu0 %v1500
    %1525 = vmatprep.subr.mxu0 0.0
    %1526 = vmatpush1.msra.mxu0 %v1501
    %1527 = vmatprep.subr.mxu0 0.0
    %1528 = vmatpush1.msra.mxu0 %v1502
    %1529 = vmatprep.subr.mxu0 0.0
    %1530 = vmatpush1.msra.mxu0 %v1503
    %1531 = vmatprep.subr.mxu0 0.0
    %1532 = vmatpush1.msra.mxu0 %v1504
    %1533 = vmatprep.subr.mxu0 0.0
    %1534 = vmatpush1.msra.mxu0 %v1505
    %1535 = vmatprep.subr.mxu0 0.0
    %1536 = vmatpush1.msra.mxu0 %v1506
    %1537 = vmatprep.subr.mxu0 0.0
    %1538 = vmatpush1.msra.mxu0 %v1507
    %1539 = vmatprep.subr.mxu0 0.0
    %1540 = vmatpush1.msra.mxu0 %v1508
    %1541 = vmatprep.subr.mxu0 0.0
    %1542 = vmatpush1.msra.mxu0 %v1509
    %1543 = vmatprep.subr.mxu0 0.0
    %1544 = vmatpush1.msra.mxu0 %v1510
    %1545 = vmatprep.subr.mxu0 0.0
    %1546 = vmatpush1.msra.mxu0 %v1511
    %1547 = vmatprep.subr.mxu0 0.0
    %1548 = vmatpush1.msra.mxu0 %v1512
    %1549 = vmatprep.subr.mxu0 0.0
    %1550 = vmatpush1.msra.mxu0 %v1513
    %1551 = vmatprep.subr.mxu0 0.0
    %1552 = vmatpush1.msra.mxu0 %v1514
    %1553 = vmatprep.subr.mxu0 0.0
    %1554 = vmatpush1.msra.mxu0 %v1515
    %1555 = vmatprep.subr.mxu0 0.0
    %1556 = vmatpush1.msra.mxu0 0.0
    %1557 = vmatprep.subr.mxu0 0.0
    %1558 = vmatpush1.msra.mxu0 0.0
    %1559 = vmatprep.subr.mxu0 0.0
    %1560 = vmatpush1.msra.mxu0 0.0
    %1561 = vmatprep.subr.mxu0 0.0
    %1562 = vmatpush1.msra.mxu0 0.0
    %1563 = vmatprep.subr.mxu0 0.0
    %1564 = vmatpush1.msra.mxu0 0.0
    %1565 = vmatprep.subr.mxu0 0.0
    %1566 = vmatpush1.msra.mxu0 0.0
    %1567 = vmatprep.subr.mxu0 0.0
    %1568 = vmatpush1.msra.mxu0 0.0
    %1569 = vmatprep.subr.mxu0 0.0
    %1570 = vmatpush1.msra.mxu0 0.0
    %1571 = vmatprep.subr.mxu0 0.0
    %1572 = vmatpush1.msra.mxu0 0.0
    %1573 = vmatprep.subr.mxu0 0.0
    %1574 = vmatpush1.msra.mxu0 0.0
    %1575 = vmatprep.subr.mxu0 0.0
    %1576 = vmatpush1.msra.mxu0 0.0
    %1577 = vmatprep.subr.mxu0 0.0
    %1578 = vmatpush1.msra.mxu0 0.0
    %1579 = vmatprep.subr.mxu0 0.0
    %1580 = vmatpush1.msra.mxu0 0.0
    %1581 = vmatprep.subr.mxu0 0.0
    %1582 = vmatpush1.msra.mxu0 0.0
    %1583 = vmatprep.subr.mxu0 0.0
    %1584 = vmatpush1.msra.mxu0 0.0
    %1585 = vmatprep.subr.mxu0 0.0
    %1586 = vmatpush1.msra.mxu0 0.0
    %1587 = vmatprep.mubr.f32.mxu0 0.0
    %1588 = vmatmul.mubr.f32.gmra.mrb[0].mxu0 %v1499
    %v1589 = vpop.f32.mrb[0].mxu0
    %v1590 = vadd.f32 %v1521, %v1589
    %v1591 = vpop.f32.mrb[0].mxu0
    %1592 = vdwg.mxu0
    %vm1593 = vcmask 48128
    %v1594 = vsel %vm1593, %v1590, -inf
    %1595 = vmax.xlane.f32.xlu0 %v1594
    %v1596 = vpop.xlane.xlu0 %1595
    %v1597 = vsub.f32 %v1590, %v1596
    %v1598 = vmul.f32 %v1597, 1.442695
    %v1599 = vpow.pop %v1598
    %v1600 = vsel %vm1593, %v1599, 0.0
    %1601 = vadd.xlane.f32.xlu0 %v1600
    %v1602 = vpop.xlane.xlu0 %1601
    %v1603 = vlog2.pop %v1602
    %v1604 = vmul.f32 %v1603, 0.6931472
    %v1605 = vsub.f32 %v1597, %v1604
    %1606 = vst.msk [vmem:[#allocation11] sm:$0xff] %vm1593, %v1605
    // Predicated region
    $region42: #{camera_classifier_forward.1} parent=1 // pred_check
      _
    $region43: #{camera_classifier_forward.1} parent=1 // pred_check_branch
      %1608 = sbr.rel (0) target = $region45
    $region44: #{camera_classifier_forward.1} parent=1 // pred_region
      %s1610 = ssub.s32 128, 128
      %1611 = vsyncadd [#allocation4], %s1610
      %s1613 = sshll.u32 [#allocation11], 4
      %s1614 = int_to_ptr.vmem [resolvable:$true] %s1613
      %1616 = dma.vmem_to_hbm [thread:$0]  %s1614, 128, %s5, [#allocation4]
    $region45: #{camera_classifier_forward.1} parent=1 // pred_fallthru
      _
    // Predicated region
    $region46: #{camera_classifier_forward.1} parent=1 // pred_check
      _
    $region47: #{camera_classifier_forward.1} parent=1 // pred_check_branch
      %1618 = sbr.rel (0) target = $region49
    $region48: #{camera_classifier_forward.1} parent=1 // pred_region
      %1619 = dma.done [#allocation4], 128
    $region49: #{camera_classifier_forward.1} parent=1 // pred_fallthru
      _
    %1620 = vsyncpa [#allocation3], 1
    %1621 = vsyncpa [#allocation6], 1
    %1622 = vsyncpa [#allocation9], 1
    %1623 = vsyncpa [#allocation4], 1

</llo_original>
